<compile_context>
chip_gen: v6e
topology: v6e:2x2x1
jax: 0.10.0
libtpu: 0.0.40
codegen_flags: <defaults>
</compile_context>

<pallas_src>
import functools

import jax
import jax.numpy as jnp
from jax.experimental import pallas as pl
from jax.experimental.pallas import tpu as pltpu

EPS = 1e-5


# --------------------------------------------------------------------------
# Kernel
# --------------------------------------------------------------------------
def resblock_kernel(x_ref, M_ref,
                    r1_ref, g1_ref, b1_ref,
                    r2_ref, g2_ref, b2_ref,
                    o_ref, *, H):
    """Fused ResidualBlock on a lane-dense (NH, WC) activation slab.

    x_ref  : (NH, WC)     activation, f32
    M_ref  : (WC, WC)     kron(ones(W,W), eye(C)) / (N*H*W): reduce+broadcast
    r*_ref : (3*WC, WC)   conv weights folded with width shift + padding
    g*/b*  : (1, WC)      BN gamma / beta tiled across the W positions
    """
    NH, WC = x_ref.shape
    x = x_ref[...].astype(jnp.float32)

    # Row masks for the kh = 0 / 2 height taps: zero the rows whose +/-1
    # height neighbour lies in a different image (implements SAME zero pad).
    # Computed once per kernel invocation (hoisted out of both convs).
    row = jax.lax.broadcasted_iota(jnp.int32, (NH, WC), 0)
    h_idx = row % H
    mask_top = (h_idx != 0).astype(jnp.float32)        # source row r-1 valid
    mask_bot = (h_idx != H - 1).astype(jnp.float32)    # source row r+1 valid

    def conv3x3(inp, r_ref):
        # Height shift = sublane roll (XLU) + row mask (VPU): no MXU FLOPs,
        # no O(NH^2) shift matrices.  Taps lane-concatenated -> ONE wide-K
        # MXU matmul against the folded width-shift/weight matrix.
        top = pltpu.roll(inp, shift=1, axis=0) * mask_top        # x[r-1]
        bot = pltpu.roll(inp, shift=NH - 1, axis=0) * mask_bot   # x[r+1]
        p = jnp.concatenate([top, inp, bot], axis=1)             # (NH, 3*WC)
        # TODO(synk): on v7x (addressable MRB) prefer three accumulated
        # K=WC matmuls to skip the (NH, 3*WC) concat store traffic.
        return jnp.dot(p, r_ref[...], preferred_element_type=jnp.float32)

    def batchnorm(y, g_ref, b_ref):
        # One-pass training-mode BN.  Sum and sum-of-squares stacked into a
        # single (2, WC) @ (WC, WC) matmul that reduces over W positions and
        # broadcasts the per-channel statistic back to every lane; the
        # 1/(N*H*W) factor is pre-folded into M on the host.
        s = jnp.sum(y, axis=0, keepdims=True)                    # (1, WC)
        q = jnp.sum(y * y, axis=0, keepdims=True)                # (1, WC)
        stats = jnp.dot(jnp.concatenate([s, q], axis=0), M_ref[...],
                        preferred_element_type=jnp.float32)      # (2, WC)
        mean = stats[0:1, :]
        var = stats[1:2, :] - mean * mean                        # biased var
        # TODO(synk): use a shifted-moment form if |mean| >> std at scale.
        scale = jax.lax.rsqrt(var + EPS) * g_ref[...]            # (1, WC)
        shift = b_ref[...] - mean * scale                        # (1, WC)
        return y * scale + shift                                 # fused affine

    def silu(y):
        # x * sigmoid(x) == x * 0.5 * (1 + tanh(x/2)): one EUP op / element.
        return y * (0.5 * jnp.tanh(0.5 * y) + 0.5)

    h = silu(batchnorm(conv3x3(x, r1_ref), g1_ref, b1_ref))
    h = batchnorm(conv3x3(h, r2_ref), g2_ref, b2_ref)
    o_ref[...] = silu(h + x).astype(o_ref.dtype)


# --------------------------------------------------------------------------
# Host-side (one-time) parameter folding
# --------------------------------------------------------------------------
def _build_conv_matrix(w_hwio, W):
    """Fold width shift + zero padding + channel mixing into (3*WC, WC).

    Row block kh is R_kh with R_kh[wi*C+ci, wo*C+co] = w[kh, wi-wo+1, ci, co]
    for |wi - wo| <= 1, else 0 (implicit SAME padding along W).
    """
    C = w_hwio.shape[2]
    dtype = w_hwio.dtype
    wi = jnp.arange(W)[:, None]
    wo = jnp.arange(W)[None, :]
    blocks = []
    for kh in range(3):
        r = jnp.zeros((W * C, W * C), dtype)
        for kw in range(3):
            shift = (wi == wo + (kw - 1)).astype(dtype)
            r = r + jnp.kron(shift, w_hwio[kh, kw])
        blocks.append(r)
    return jnp.concatenate(blocks, axis=0)                       # (3*WC, WC)


def _fold_params(params, N, H, W, C):
    """Compute folded kernel operands once (not on the per-call path)."""
    w1, g1, b1, w2, g2, b2 = params
    WC = W * C
    inv_count = 1.0 / float(N * H * W)
    # lane j = w*C + c ; (s @ M) sums over all w and broadcasts per channel;
    # the 1/(N*H*W) mean factor is folded in here.
    M = jnp.kron(jnp.ones((W, W), jnp.float32),
                 jnp.eye(C, dtype=jnp.float32)) * inv_count      # (WC, WC)
    r1 = _build_conv_matrix(w1, W)
    r2 = _build_conv_matrix(w2, W)
    g1t = jnp.tile(g1, W).reshape(1, WC)
    b1t = jnp.tile(b1, W).reshape(1, WC)
    g2t = jnp.tile(g2, W).reshape(1, WC)
    b2t = jnp.tile(b2, W).reshape(1, WC)
    return (M, r1, g1t, b1t, r2, g2t, b2t)


# --------------------------------------------------------------------------
# Forward + public factory
# --------------------------------------------------------------------------
def _forward(x_nchw, folded):
    M, r1, g1t, b1t, r2, g2t, b2t = folded
    N, C, H, W = x_nchw.shape
    NH, WC = N * H, W * C
    # NCHW boundary kept for PyTorch parity; keep surrounding model NHWC to
    # drop these two transposes in a real pipeline.
    x2d = jnp.transpose(x_nchw, (0, 2, 3, 1)).reshape(NH, WC)

    kernel = functools.partial(resblock_kernel, H=H)

    out2d = pl.pallas_call(
        kernel,
        out_shape=jax.ShapeDtypeStruct((NH, WC), x_nchw.dtype),
        grid=(1,),
        in_specs=[
            pl.BlockSpec((NH, WC), lambda i: (0, 0)),
            pl.BlockSpec((WC, WC), lambda i: (0, 0)),
            pl.BlockSpec((3 * WC, WC), lambda i: (0, 0)),
            pl.BlockSpec((1, WC), lambda i: (0, 0)),
            pl.BlockSpec((1, WC), lambda i: (0, 0)),
            pl.BlockSpec((3 * WC, WC), lambda i: (0, 0)),
            pl.BlockSpec((1, WC), lambda i: (0, 0)),
            pl.BlockSpec((1, WC), lambda i: (0, 0)),
        ],
        out_specs=pl.BlockSpec((NH, WC), lambda i: (0, 0)),
        compiler_params=pltpu.CompilerParams(
            dimension_semantics=("arbitrary",)),
    )(x2d, M, r1, g1t, b1t, r2, g2t, b2t)

    out = out2d.reshape(N, H, W, C)
    return jnp.transpose(out, (0, 3, 1, 2))                      # NHWC -> NCHW


def make_residual_block(params, input_shape_nchw):
    """Fold parameters once; return a jitted forward fn of x (NCHW)."""
    N, C, H, W = input_shape_nchw
    folded = _fold_params(params, N, H, W, C)
    return jax.jit(functools.partial(_forward, folded=folded))


# --------------------------------------------------------------------------
# Pure-JAX reference (matches PyTorch forward with training-mode BN)
# --------------------------------------------------------------------------
def reference_forward(x_nchw, params):
    w1, g1, b1, w2, g2, b2 = params

    def conv(x, w):
        return jax.lax.conv_general_dilated(
            x, w, window_strides=(1, 1), padding="SAME",
            dimension_numbers=("NHWC", "HWIO", "NHWC"),
            precision=jax.lax.Precision.HIGHEST)

    def bn(y, g, b):
        mean = jnp.mean(y, axis=(0, 1, 2), keepdims=True)
        var = jnp.mean(jnp.square(y - mean), axis=(0, 1, 2), keepdims=True)
        return (y - mean) * jax.lax.rsqrt(var + EPS) * g + b

    x = jnp.transpose(x_nchw, (0, 2, 3, 1))
    h = jax.nn.silu(bn(conv(x, w1), g1, b1))
    h = bn(conv(h, w2), g2, b2)
    out = jax.nn.silu(h + x)
    return jnp.transpose(out, (0, 3, 1, 2))


if __name__ == "__main__":
    N, C, H, W = 2, 8, 16, 16          # W*C = 128 -> exactly lane-dense

    key = jax.random.PRNGKey(0)
    k1, k2, k3, k4, kx = jax.random.split(key, 5)

    # Deterministic parameters (conv weights in HWIO; non-trivial BN affine).
    w1 = jax.random.normal(k1, (3, 3, C, C), jnp.float32) * 0.1
    w2 = jax.random.normal(k2, (3, 3, C, C), jnp.float32) * 0.1
    g1 = 1.0 + 0.1 * jax.random.normal(k3, (C,), jnp.float32)
    b1 = 0.1 * jax.random.normal(k4, (C,), jnp.float32)
    g2 = jnp.ones((C,), jnp.float32)
    b2 = jnp.zeros((C,), jnp.float32)
    params = (w1, g1, b1, w2, g2, b2)

    x = jax.random.normal(kx, (N, C, H, W), jnp.float32)

    resblock = make_residual_block(params, (N, C, H, W))
    out = jax.block_until_ready(resblock(x))
    ref = jax.block_until_ready(reference_forward(x, params))

    assert out.shape == x.shape
    err = jnp.max(jnp.abs(out - ref))
    assert jnp.allclose(out, ref, atol=2e-3, rtol=2e-3), f"max abs diff {err}"
    print("KERNEL_OK")
</pallas_src>

<mosaic_0001>
module attributes {stable_mosaic.version = 11 : i64} {
  func.func @resblock_kernel(%arg0: i32, %arg1: memref<32x128xf32, #tpu.memory_space<vmem>>, %arg2: memref<128x128xf32, #tpu.memory_space<vmem>>, %arg3: memref<384x128xf32, #tpu.memory_space<vmem>>, %arg4: memref<1x128xf32, #tpu.memory_space<vmem>>, %arg5: memref<1x128xf32, #tpu.memory_space<vmem>>, %arg6: memref<384x128xf32, #tpu.memory_space<vmem>>, %arg7: memref<1x128xf32, #tpu.memory_space<vmem>>, %arg8: memref<1x128xf32, #tpu.memory_space<vmem>>, %arg9: memref<32x128xf32, #tpu.memory_space<vmem>>) attributes {dimension_semantics = [#tpu.dimension_semantics<arbitrary>], iteration_bounds = array<i64: 1>, scalar_prefetch = 0 : i64, scratch_operands = 0 : i64, tpu.core_type = #tpu.core_type<tc>, window_params = [{pipeline_mode = #tpu.pipeline_mode<synchronous>, transform_indices = @transform_0, window_bounds = array<i64: 32, 128>}, {pipeline_mode = #tpu.pipeline_mode<synchronous>, transform_indices = @transform_1, window_bounds = array<i64: 128, 128>}, {pipeline_mode = #tpu.pipeline_mode<synchronous>, transform_indices = @transform_2, window_bounds = array<i64: 384, 128>}, {pipeline_mode = #tpu.pipeline_mode<synchronous>, transform_indices = @transform_3, window_bounds = array<i64: 1, 128>}, {pipeline_mode = #tpu.pipeline_mode<synchronous>, transform_indices = @transform_4, window_bounds = array<i64: 1, 128>}, {pipeline_mode = #tpu.pipeline_mode<synchronous>, transform_indices = @transform_5, window_bounds = array<i64: 384, 128>}, {pipeline_mode = #tpu.pipeline_mode<synchronous>, transform_indices = @transform_6, window_bounds = array<i64: 1, 128>}, {pipeline_mode = #tpu.pipeline_mode<synchronous>, transform_indices = @transform_7, window_bounds = array<i64: 1, 128>}, {pipeline_mode = #tpu.pipeline_mode<synchronous>, transform_indices = @transform_8, window_bounds = array<i64: 32, 128>}]} {
    %c0 = arith.constant 0 : index
    %c0_0 = arith.constant 0 : index
    %0 = vector.load %arg1[%c0, %c0_0] : memref<32x128xf32, #tpu.memory_space<vmem>>, vector<32x128xf32>
    %1 = tpu.iota {dimensions = array<i32: 0>} : vector<32x128xi32>
    %c16_i32 = arith.constant 16 : i32
    %c0_i32 = arith.constant 0 : i32
    %2 = arith.cmpi eq, %c16_i32, %c0_i32 : i32
    %c1_i32 = arith.constant 1 : i32
    %3 = arith.select %2, %c1_i32, %c16_i32 : i32
    %4 = vector.broadcast %3 : i32 to vector<32x128xi32>
    %5 = arith.remsi %1, %4 : vector<32x128xi32>
    %c0_i32_1 = arith.constant 0 : i32
    %6 = vector.broadcast %c0_i32_1 : i32 to vector<32x128xi32>
    %7 = arith.cmpi ne, %5, %6 : vector<32x128xi32>
    %c0_i32_2 = arith.constant 0 : i32
    %8 = vector.broadcast %c0_i32_2 : i32 to vector<32x128xi32>
    %9 = arith.cmpi slt, %5, %8 : vector<32x128xi32>
    %c0_i32_3 = arith.constant 0 : i32
    %10 = arith.cmpi slt, %3, %c0_i32_3 : i32
    %11 = vector.broadcast %10 : i1 to vector<32x128xi1>
    %12 = vector.broadcast %11 : vector<32x128xi1> to vector<32x128xi1>
    %13 = arith.xori %9, %12 : vector<32x128xi1>
    %14 = arith.andi %13, %7 : vector<32x128xi1>
    %15 = vector.broadcast %3 : i32 to vector<32x128xi32>
    %16 = arith.addi %5, %15 : vector<32x128xi32>
    %17 = arith.select %14, %16, %5 : vector<32x128xi1>, vector<32x128xi32>
    %c0_i32_4 = arith.constant 0 : i32
    %18 = vector.broadcast %c0_i32_4 : i32 to vector<32x128xi32>
    %19 = arith.cmpi ne, %17, %18 : vector<32x128xi32>
    %20 = arith.extui %19 : vector<32x128xi1> to vector<32x128xi32>
    %21 = arith.sitofp %20 : vector<32x128xi32> to vector<32x128xf32>
    %c15_i32 = arith.constant 15 : i32
    %22 = vector.broadcast %c15_i32 : i32 to vector<32x128xi32>
    %23 = arith.cmpi ne, %17, %22 : vector<32x128xi32>
    %24 = arith.extui %23 : vector<32x128xi1> to vector<32x128xi32>
    %25 = arith.sitofp %24 : vector<32x128xi32> to vector<32x128xf32>
    %c1_i32_5 = arith.constant 1 : i32
    %26 = tpu.dynamic_rotate %0 by %c1_i32_5 dim 0 : vector<32x128xf32>, i32 -> vector<32x128xf32>
    %27 = arith.mulf %26, %21 : vector<32x128xf32>
    %c31_i32 = arith.constant 31 : i32
    %28 = tpu.dynamic_rotate %0 by %c31_i32 dim 0 : vector<32x128xf32>, i32 -> vector<32x128xf32>
    %29 = arith.mulf %28, %25 : vector<32x128xf32>
    %30 = tpu.concatenate %27, %0, %29 in 1 : vector<32x128xf32>, vector<32x128xf32>, vector<32x128xf32> -> vector<32x384xf32>
    %c0_6 = arith.constant 0 : index
    %c0_7 = arith.constant 0 : index
    %31 = vector.load %arg3[%c0_6, %c0_7] : memref<384x128xf32, #tpu.memory_space<vmem>>, vector<384x128xf32>
    %cst = arith.constant dense<0.000000e+00> : vector<32x128xf32>
    %32 = tpu.matmul %30, %31, %cst {dimension_numbers = #tpu.dot_dimension_numbers<[1], [0], [0], [1], [0, 0, 1, 1], [], []>} : vector<32x384xf32>, vector<384x128xf32>, vector<32x128xf32> -> vector<32x128xf32>
    %cst_8 = arith.constant dense<0.000000e+00> : vector<128xf32>
    %33 = vector.multi_reduction <add>, %32, %cst_8 [0] : vector<32x128xf32> to vector<128xf32>
    %34 = vector.shape_cast %33 : vector<128xf32> to vector<1x128xf32>
    %35 = arith.mulf %32, %32 : vector<32x128xf32>
    %cst_9 = arith.constant dense<0.000000e+00> : vector<128xf32>
    %36 = vector.multi_reduction <add>, %35, %cst_9 [0] : vector<32x128xf32> to vector<128xf32>
    %37 = vector.shape_cast %36 : vector<128xf32> to vector<1x128xf32>
    %38 = tpu.concatenate %34, %37 in 0 : vector<1x128xf32>, vector<1x128xf32> -> vector<2x128xf32>
    %c0_10 = arith.constant 0 : index
    %c0_11 = arith.constant 0 : index
    %39 = vector.load %arg2[%c0_10, %c0_11] : memref<128x128xf32, #tpu.memory_space<vmem>>, vector<128x128xf32>
    %cst_12 = arith.constant dense<0.000000e+00> : vector<2x128xf32>
    %40 = tpu.matmul %38, %39, %cst_12 {dimension_numbers = #tpu.dot_dimension_numbers<[1], [0], [0], [1], [0, 0, 1, 1], [], []>} : vector<2x128xf32>, vector<128x128xf32>, vector<2x128xf32> -> vector<2x128xf32>
    %41 = vector.extract_strided_slice %40 {offsets = [0, 0], sizes = [1, 128], strides = [1, 1]} : vector<2x128xf32> to vector<1x128xf32>
    %42 = vector.extract_strided_slice %40 {offsets = [1, 0], sizes = [1, 128], strides = [1, 1]} : vector<2x128xf32> to vector<1x128xf32>
    %43 = arith.mulf %41, %41 : vector<1x128xf32>
    %44 = arith.subf %42, %43 : vector<1x128xf32>
    %cst_13 = arith.constant 9.99999974E-6 : f32
    %45 = vector.broadcast %cst_13 : f32 to vector<1x128xf32>
    %46 = arith.addf %44, %45 : vector<1x128xf32>
    %47 = math.rsqrt %46 : vector<1x128xf32>
    %c0_14 = arith.constant 0 : index
    %c0_15 = arith.constant 0 : index
    %48 = vector.load %arg4[%c0_14, %c0_15] : memref<1x128xf32, #tpu.memory_space<vmem>>, vector<1x128xf32>
    %49 = arith.mulf %47, %48 : vector<1x128xf32>
    %c0_16 = arith.constant 0 : index
    %c0_17 = arith.constant 0 : index
    %50 = vector.load %arg5[%c0_16, %c0_17] : memref<1x128xf32, #tpu.memory_space<vmem>>, vector<1x128xf32>
    %51 = arith.mulf %41, %49 : vector<1x128xf32>
    %52 = arith.subf %50, %51 : vector<1x128xf32>
    %53 = vector.broadcast %49 : vector<1x128xf32> to vector<32x128xf32>
    %54 = arith.mulf %32, %53 : vector<32x128xf32>
    %55 = vector.broadcast %52 : vector<1x128xf32> to vector<32x128xf32>
    %56 = arith.addf %54, %55 : vector<32x128xf32>
    %cst_18 = arith.constant 5.000000e-01 : f32
    %57 = vector.broadcast %cst_18 : f32 to vector<32x128xf32>
    %58 = arith.mulf %57, %56 : vector<32x128xf32>
    %59 = math.tanh %58 : vector<32x128xf32>
    %cst_19 = arith.constant 5.000000e-01 : f32
    %60 = vector.broadcast %cst_19 : f32 to vector<32x128xf32>
    %61 = arith.mulf %60, %59 : vector<32x128xf32>
    %cst_20 = arith.constant 5.000000e-01 : f32
    %62 = vector.broadcast %cst_20 : f32 to vector<32x128xf32>
    %63 = arith.addf %61, %62 : vector<32x128xf32>
    %64 = arith.mulf %56, %63 : vector<32x128xf32>
    %c1_i32_21 = arith.constant 1 : i32
    %65 = tpu.dynamic_rotate %64 by %c1_i32_21 dim 0 : vector<32x128xf32>, i32 -> vector<32x128xf32>
    %66 = arith.mulf %65, %21 : vector<32x128xf32>
    %c31_i32_22 = arith.constant 31 : i32
    %67 = tpu.dynamic_rotate %64 by %c31_i32_22 dim 0 : vector<32x128xf32>, i32 -> vector<32x128xf32>
    %68 = arith.mulf %67, %25 : vector<32x128xf32>
    %69 = tpu.concatenate %66, %64, %68 in 1 : vector<32x128xf32>, vector<32x128xf32>, vector<32x128xf32> -> vector<32x384xf32>
    %c0_23 = arith.constant 0 : index
    %c0_24 = arith.constant 0 : index
    %70 = vector.load %arg6[%c0_23, %c0_24] : memref<384x128xf32, #tpu.memory_space<vmem>>, vector<384x128xf32>
    %cst_25 = arith.constant dense<0.000000e+00> : vector<32x128xf32>
    %71 = tpu.matmul %69, %70, %cst_25 {dimension_numbers = #tpu.dot_dimension_numbers<[1], [0], [0], [1], [0, 0, 1, 1], [], []>} : vector<32x384xf32>, vector<384x128xf32>, vector<32x128xf32> -> vector<32x128xf32>
    %cst_26 = arith.constant dense<0.000000e+00> : vector<128xf32>
    %72 = vector.multi_reduction <add>, %71, %cst_26 [0] : vector<32x128xf32> to vector<128xf32>
    %73 = vector.shape_cast %72 : vector<128xf32> to vector<1x128xf32>
    %74 = arith.mulf %71, %71 : vector<32x128xf32>
    %cst_27 = arith.constant dense<0.000000e+00> : vector<128xf32>
    %75 = vector.multi_reduction <add>, %74, %cst_27 [0] : vector<32x128xf32> to vector<128xf32>
    %76 = vector.shape_cast %75 : vector<128xf32> to vector<1x128xf32>
    %77 = tpu.concatenate %73, %76 in 0 : vector<1x128xf32>, vector<1x128xf32> -> vector<2x128xf32>
    %c0_28 = arith.constant 0 : index
    %c0_29 = arith.constant 0 : index
    %78 = vector.load %arg2[%c0_28, %c0_29] : memref<128x128xf32, #tpu.memory_space<vmem>>, vector<128x128xf32>
    %cst_30 = arith.constant dense<0.000000e+00> : vector<2x128xf32>
    %79 = tpu.matmul %77, %78, %cst_30 {dimension_numbers = #tpu.dot_dimension_numbers<[1], [0], [0], [1], [0, 0, 1, 1], [], []>} : vector<2x128xf32>, vector<128x128xf32>, vector<2x128xf32> -> vector<2x128xf32>
    %80 = vector.extract_strided_slice %79 {offsets = [0, 0], sizes = [1, 128], strides = [1, 1]} : vector<2x128xf32> to vector<1x128xf32>
    %81 = vector.extract_strided_slice %79 {offsets = [1, 0], sizes = [1, 128], strides = [1, 1]} : vector<2x128xf32> to vector<1x128xf32>
    %82 = arith.mulf %80, %80 : vector<1x128xf32>
    %83 = arith.subf %81, %82 : vector<1x128xf32>
    %cst_31 = arith.constant 9.99999974E-6 : f32
    %84 = vector.broadcast %cst_31 : f32 to vector<1x128xf32>
    %85 = arith.addf %83, %84 : vector<1x128xf32>
    %86 = math.rsqrt %85 : vector<1x128xf32>
    %c0_32 = arith.constant 0 : index
    %c0_33 = arith.constant 0 : index
    %87 = vector.load %arg7[%c0_32, %c0_33] : memref<1x128xf32, #tpu.memory_space<vmem>>, vector<1x128xf32>
    %88 = arith.mulf %86, %87 : vector<1x128xf32>
    %c0_34 = arith.constant 0 : index
    %c0_35 = arith.constant 0 : index
    %89 = vector.load %arg8[%c0_34, %c0_35] : memref<1x128xf32, #tpu.memory_space<vmem>>, vector<1x128xf32>
    %90 = arith.mulf %80, %88 : vector<1x128xf32>
    %91 = arith.subf %89, %90 : vector<1x128xf32>
    %92 = vector.broadcast %88 : vector<1x128xf32> to vector<32x128xf32>
    %93 = arith.mulf %71, %92 : vector<32x128xf32>
    %94 = vector.broadcast %91 : vector<1x128xf32> to vector<32x128xf32>
    %95 = arith.addf %93, %94 : vector<32x128xf32>
    %96 = arith.addf %95, %0 : vector<32x128xf32>
    %cst_36 = arith.constant 5.000000e-01 : f32
    %97 = vector.broadcast %cst_36 : f32 to vector<32x128xf32>
    %98 = arith.mulf %97, %96 : vector<32x128xf32>
    %99 = math.tanh %98 : vector<32x128xf32>
    %cst_37 = arith.constant 5.000000e-01 : f32
    %100 = vector.broadcast %cst_37 : f32 to vector<32x128xf32>
    %101 = arith.mulf %100, %99 : vector<32x128xf32>
    %cst_38 = arith.constant 5.000000e-01 : f32
    %102 = vector.broadcast %cst_38 : f32 to vector<32x128xf32>
    %103 = arith.addf %101, %102 : vector<32x128xf32>
    %104 = arith.mulf %96, %103 : vector<32x128xf32>
    %c0_39 = arith.constant 0 : index
    %c0_40 = arith.constant 0 : index
    %105 = vector.load %arg9[%c0_39, %c0_40] : memref<32x128xf32, #tpu.memory_space<vmem>>, vector<32x128xf32>
    tpu.vector_store %arg9[%c0_39, %c0_40], %104 {strides = array<i32>} : memref<32x128xf32, #tpu.memory_space<vmem>>, vector<32x128xf32>,
    return
  }
  func.func @transform_0(%arg0: i32) -> (i32, i32) {
    %c0_i32 = arith.constant 0 : i32
    %c0_i32_0 = arith.constant 0 : i32
    %c0_i32_1 = arith.constant 0 : i32
    return %c0_i32, %c0_i32_0 : i32, i32
  }
  func.func @transform_1(%arg0: i32) -> (i32, i32) {
    %c0_i32 = arith.constant 0 : i32
    %c0_i32_0 = arith.constant 0 : i32
    %c0_i32_1 = arith.constant 0 : i32
    return %c0_i32, %c0_i32_0 : i32, i32
  }
  func.func @transform_2(%arg0: i32) -> (i32, i32) {
    %c0_i32 = arith.constant 0 : i32
    %c0_i32_0 = arith.constant 0 : i32
    %c0_i32_1 = arith.constant 0 : i32
    return %c0_i32, %c0_i32_0 : i32, i32
  }
  func.func @transform_3(%arg0: i32) -> (i32, i32) {
    %c0_i32 = arith.constant 0 : i32
    %c0_i32_0 = arith.constant 0 : i32
    %c0_i32_1 = arith.constant 0 : i32
    return %c0_i32, %c0_i32_0 : i32, i32
  }
  func.func @transform_4(%arg0: i32) -> (i32, i32) {
    %c0_i32 = arith.constant 0 : i32
    %c0_i32_0 = arith.constant 0 : i32
    %c0_i32_1 = arith.constant 0 : i32
    return %c0_i32, %c0_i32_0 : i32, i32
  }
  func.func @transform_5(%arg0: i32) -> (i32, i32) {
    %c0_i32 = arith.constant 0 : i32
    %c0_i32_0 = arith.constant 0 : i32
    %c0_i32_1 = arith.constant 0 : i32
    return %c0_i32, %c0_i32_0 : i32, i32
  }
  func.func @transform_6(%arg0: i32) -> (i32, i32) {
    %c0_i32 = arith.constant 0 : i32
    %c0_i32_0 = arith.constant 0 : i32
    %c0_i32_1 = arith.constant 0 : i32
    return %c0_i32, %c0_i32_0 : i32, i32
  }
  func.func @transform_7(%arg0: i32) -> (i32, i32) {
    %c0_i32 = arith.constant 0 : i32
    %c0_i32_0 = arith.constant 0 : i32
    %c0_i32_1 = arith.constant 0 : i32
    return %c0_i32, %c0_i32_0 : i32, i32
  }
  func.func @transform_8(%arg0: i32) -> (i32, i32) {
    %c0_i32 = arith.constant 0 : i32
    %c0_i32_0 = arith.constant 0 : i32
    %c0_i32_1 = arith.constant 0 : i32
    return %c0_i32, %c0_i32_0 : i32, i32
  }
}

</mosaic_0001>

<llo_original>
// kernel: _forward.1
$region0: #{_forward.1}
  #allocation0 [shape = 'u32[]', space=smem, size = 0x4, offset = 0x4, fixed_abs, tag = 'smem constant byte address 0x4 - core index']
  #allocation1 [shape = 'u32[144,128]{1,0:T(1,128)}', space=vmem, size = 0x12000, scoped, tag = 'internal scratch']
  %s0 = inlined_call_operand.vmem [shape: f32[32,128], index: 0, kind: input, shape index: {}]
  %s1 = inlined_call_operand.vmem [shape: f32[128,128], index: 1, kind: input, shape index: {}]
  %s2 = inlined_call_operand.vmem [shape: f32[384,128], index: 2, kind: input, shape index: {}]
  %s3 = inlined_call_operand.vmem [shape: f32[1,128], index: 3, kind: input, shape index: {}]
  %s4 = inlined_call_operand.vmem [shape: f32[1,128], index: 4, kind: input, shape index: {}]
  %s5 = inlined_call_operand.vmem [shape: f32[384,128], index: 5, kind: input, shape index: {}]
  %s6 = inlined_call_operand.vmem [shape: f32[1,128], index: 6, kind: input, shape index: {}]
  %s7 = inlined_call_operand.vmem [shape: f32[1,128], index: 7, kind: input, shape index: {}]
  %s8 = inlined_call_operand.vmem [shape: f32[32,128], index: 8, kind: output, shape index: {}]
  %s9 = sld [smem:[#allocation0]]
  $region42: #{_forward.1} parent=0
    _
  %s11 = ssub.s32 1, %s9
  %s12 = scalar_select 0, %s11, %s9
  // Predicated region
  $region2: #{_forward.1} parent=0 // pred_check
    _
  $region3: #{_forward.1} parent=0 // pred_check_branch
    %14 = sbr.rel (0) target = $region5
  $region4: #{_forward.1} parent=0 // pred_region
    _
  $region5: #{_forward.1} parent=0 // pred_fallthru
    _
  // Predicated region
  $region6: #{_forward.1} parent=0 // pred_check
    _
  $region7: #{_forward.1} parent=0 // pred_check_branch
    %16 = sbr.rel (0) target = $region9
  $region8: #{_forward.1} parent=0 // pred_region
    _
  $region9: #{_forward.1} parent=0 // pred_fallthru
    _
  // Predicated region
  $region10: #{_forward.1} parent=0 // pred_check
    _
  $region11: #{_forward.1} parent=0 // pred_check_branch
    %18 = sbr.rel (0) target = $region13
  $region12: #{_forward.1} parent=0 // pred_region
    _
  $region13: #{_forward.1} parent=0 // pred_fallthru
    _
  // Predicated region
  $region14: #{_forward.1} parent=0 // pred_check
    _
  $region15: #{_forward.1} parent=0 // pred_check_branch
    %20 = sbr.rel (0) target = $region17
  $region16: #{_forward.1} parent=0 // pred_region
    _
  $region17: #{_forward.1} parent=0 // pred_fallthru
    _
  // Predicated region
  $region18: #{_forward.1} parent=0 // pred_check
    _
  $region19: #{_forward.1} parent=0 // pred_check_branch
    %22 = sbr.rel (0) target = $region21
  $region20: #{_forward.1} parent=0 // pred_region
    _
  $region21: #{_forward.1} parent=0 // pred_fallthru
    _
  // Predicated region
  $region22: #{_forward.1} parent=0 // pred_check
    _
  $region23: #{_forward.1} parent=0 // pred_check_branch
    %24 = sbr.rel (0) target = $region25
  $region24: #{_forward.1} parent=0 // pred_region
    _
  $region25: #{_forward.1} parent=0 // pred_fallthru
    _
  // Predicated region
  $region26: #{_forward.1} parent=0 // pred_check
    _
  $region27: #{_forward.1} parent=0 // pred_check_branch
    %26 = sbr.rel (0) target = $region29
  $region28: #{_forward.1} parent=0 // pred_region
    _
  $region29: #{_forward.1} parent=0 // pred_fallthru
    _
  // Predicated region
  $region30: #{_forward.1} parent=0 // pred_check
    _
  $region31: #{_forward.1} parent=0 // pred_check_branch
    %28 = sbr.rel (0) target = $region33
  $region32: #{_forward.1} parent=0 // pred_region
    _
  $region33: #{_forward.1} parent=0 // pred_fallthru
    _
  %v29 = vld [vmem:[%s0] sm:$0xff]
  %v30 = vld [vmem:[%s0 + $0x8] sm:$0xff]
  %v31 = vld [vmem:[%s0 + $0x10] sm:$0xff]
  %v32 = vld [vmem:[%s0 + $0x18] sm:$0xff]
  %v33 = vlaneseq
  %v34 = vshrl.u32 %v33, 7
  %v35 = vadd.s32 %v34, 8
  %v36 = vadd.s32 %v34, 16
  %v37 = vadd.s32 %v34, 24
  %vm38 = vcmp.lt.s32.totalorder %v34, 0
  %v39 = vsub.s32 0, %v34
  %v40 = vsel %vm38, %v39, %v34
  %v41 = vshrl.u32 %v40, 4
  %v42 = vand.u32 %v40, 15
  %v43 = vsub.s32 0, %v42
  %v44 = vsel %vm38, %v43, %v42
  %vm45 = vcmp.lt.s32.totalorder %v35, 0
  %v46 = vsub.s32 0, %v35
  %v47 = vsel %vm45, %v46, %v35
  %v48 = vshrl.u32 %v47, 4
  %v49 = vand.u32 %v47, 15
  %v50 = vsub.s32 0, %v49
  %v51 = vsel %vm45, %v50, %v49
  %vm52 = vcmp.lt.s32.totalorder %v36, 0
  %v53 = vsub.s32 0, %v36
  %v54 = vsel %vm52, %v53, %v36
  %v55 = vshrl.u32 %v54, 4
  %v56 = vand.u32 %v54, 15
  %v57 = vsub.s32 0, %v56
  %v58 = vsel %vm52, %v57, %v56
  %vm59 = vcmp.lt.s32.totalorder %v37, 0
  %v60 = vsub.s32 0, %v37
  %v61 = vsel %vm59, %v60, %v37
  %v62 = vshrl.u32 %v61, 4
  %v63 = vand.u32 %v61, 15
  %v64 = vsub.s32 0, %v63
  %v65 = vsel %vm59, %v64, %v63
  %vm66 = vcmp.ne.s32.totalorder %v44, 0
  %vm67 = vcmp.ne.s32.totalorder %v51, 0
  %vm68 = vcmp.ne.s32.totalorder %v58, 0
  %vm69 = vcmp.ne.s32.totalorder %v65, 0
  %vm70 = vcmp.lt.s32.totalorder %v44, 0
  %vm71 = vcmp.lt.s32.totalorder %v51, 0
  %vm72 = vcmp.lt.s32.totalorder %v58, 0
  %vm73 = vcmp.lt.s32.totalorder %v65, 0
  %vm74 = vmand %vm70, %vm66
  %vm75 = vmand %vm71, %vm67
  %vm76 = vmand %vm72, %vm68
  %vm77 = vmand %vm73, %vm69
  %v78 = vadd.s32 %v44, 16
  %v79 = vadd.s32 %v51, 16
  %v80 = vadd.s32 %v58, 16
  %v81 = vadd.s32 %v65, 16
  %v82 = vsel %vm74, %v78, %v44
  %v83 = vsel %vm75, %v79, %v51
  %v84 = vsel %vm76, %v80, %v58
  %v85 = vsel %vm77, %v81, %v65
  %vm86 = vcmp.ne.s32.totalorder %v82, 0
  %vm87 = vcmp.ne.s32.totalorder %v83, 0
  %vm88 = vcmp.ne.s32.totalorder %v84, 0
  %vm89 = vcmp.ne.s32.totalorder %v85, 0
  %v90 = vsel %vm86, 1, 0
  %v91 = vsel %vm87, 1, 0
  %v92 = vsel %vm88, 1, 0
  %v93 = vsel %vm89, 1, 0
  %v94 = vcvt.s32.f32 %v90
  %v95 = vcvt.s32.f32 %v91
  %v96 = vcvt.s32.f32 %v92
  %v97 = vcvt.s32.f32 %v93
  %vm98 = vcmp.ne.s32.totalorder %v82, 15
  %vm99 = vcmp.ne.s32.totalorder %v83, 15
  %vm100 = vcmp.ne.s32.totalorder %v84, 15
  %vm101 = vcmp.ne.s32.totalorder %v85, 15
  %v102 = vsel %vm98, 1, 0
  %v103 = vsel %vm99, 1, 0
  %v104 = vsel %vm100, 1, 0
  %v105 = vsel %vm101, 1, 0
  %v106 = vcvt.s32.f32 %v102
  %v107 = vcvt.s32.f32 %v103
  %v108 = vcvt.s32.f32 %v104
  %v109 = vcvt.s32.f32 %v105
  %v110 = vrot.slane %v29, 7
  %v111 = vrot.slane %v30, 7
  %v112 = vrot.slane %v31, 7
  %v113 = vrot.slane %v32, 7
  %vm114 = vcmp.lt.s32.totalorder %v34, 1
  %v115 = vsel %vm114, %v112, %v113
  %v116 = vsel %vm114, %v111, %v112
  %v117 = vsel %vm114, %v110, %v111
  %v118 = vsel %vm114, %v113, %v110
  %v119 = vmul.f32 %v118, %v94
  %v120 = vmul.f32 %v117, %v95
  %v121 = vmul.f32 %v116, %v96
  %v122 = vmul.f32 %v115, %v97
  %v123 = vrot.slane %v29, 1
  %v124 = vrot.slane %v30, 1
  %v125 = vrot.slane %v31, 1
  %v126 = vrot.slane %v32, 1
  %vm127 = vcmp.lt.s32.totalorder %v34, 7
  %v128 = vsel %vm127, %v125, %v126
  %v129 = vsel %vm127, %v124, %v125
  %v130 = vsel %vm127, %v123, %v124
  %v131 = vsel %vm127, %v126, %v123
  %v132 = vmul.f32 %v130, %v106
  %v133 = vmul.f32 %v129, %v107
  %v134 = vmul.f32 %v128, %v108
  %v135 = vmul.f32 %v131, %v109
  %v136 = vld [vmem:[%s2] sm:$0xff]
  %v137 = vld [vmem:[%s2 + $0x8] sm:$0xff]
  %v138 = vld [vmem:[%s2 + $0x10] sm:$0xff]
  %v139 = vld [vmem:[%s2 + $0x18] sm:$0xff]
  %v140 = vld [vmem:[%s2 + $0x20] sm:$0xff]
  %v141 = vld [vmem:[%s2 + $0x28] sm:$0xff]
  %v142 = vld [vmem:[%s2 + $0x30] sm:$0xff]
  %v143 = vld [vmem:[%s2 + $0x38] sm:$0xff]
  %v144 = vld [vmem:[%s2 + $0x40] sm:$0xff]
  %v145 = vld [vmem:[%s2 + $0x48] sm:$0xff]
  %v146 = vld [vmem:[%s2 + $0x50] sm:$0xff]
  %v147 = vld [vmem:[%s2 + $0x58] sm:$0xff]
  %v148 = vld [vmem:[%s2 + $0x60] sm:$0xff]
  %v149 = vld [vmem:[%s2 + $0x68] sm:$0xff]
  %v150 = vld [vmem:[%s2 + $0x70] sm:$0xff]
  %v151 = vld [vmem:[%s2 + $0x78] sm:$0xff]
  %v152 = vld [vmem:[%s2 + $0x80] sm:$0xff]
  %v153 = vld [vmem:[%s2 + $0x88] sm:$0xff]
  %v154 = vld [vmem:[%s2 + $0x90] sm:$0xff]
  %v155 = vld [vmem:[%s2 + $0x98] sm:$0xff]
  %v156 = vld [vmem:[%s2 + $0xa0] sm:$0xff]
  %v157 = vld [vmem:[%s2 + $0xa8] sm:$0xff]
  %v158 = vld [vmem:[%s2 + $0xb0] sm:$0xff]
  %v159 = vld [vmem:[%s2 + $0xb8] sm:$0xff]
  %v160 = vld [vmem:[%s2 + $0xc0] sm:$0xff]
  %v161 = vld [vmem:[%s2 + $0xc8] sm:$0xff]
  %v162 = vld [vmem:[%s2 + $0xd0] sm:$0xff]
  %v163 = vld [vmem:[%s2 + $0xd8] sm:$0xff]
  %v164 = vld [vmem:[%s2 + $0xe0] sm:$0xff]
  %v165 = vld [vmem:[%s2 + $0xe8] sm:$0xff]
  %v166 = vld [vmem:[%s2 + $0xf0] sm:$0xff]
  %v167 = vld [vmem:[%s2 + $0xf8] sm:$0xff]
  %v168 = vld [vmem:[%s2 + $0x100] sm:$0xff]
  %v169 = vld [vmem:[%s2 + $0x108] sm:$0xff]
  %v170 = vld [vmem:[%s2 + $0x110] sm:$0xff]
  %v171 = vld [vmem:[%s2 + $0x118] sm:$0xff]
  %v172 = vld [vmem:[%s2 + $0x120] sm:$0xff]
  %v173 = vld [vmem:[%s2 + $0x128] sm:$0xff]
  %v174 = vld [vmem:[%s2 + $0x130] sm:$0xff]
  %v175 = vld [vmem:[%s2 + $0x138] sm:$0xff]
  %v176 = vld [vmem:[%s2 + $0x140] sm:$0xff]
  %v177 = vld [vmem:[%s2 + $0x148] sm:$0xff]
  %v178 = vld [vmem:[%s2 + $0x150] sm:$0xff]
  %v179 = vld [vmem:[%s2 + $0x158] sm:$0xff]
  %v180 = vld [vmem:[%s2 + $0x160] sm:$0xff]
  %v181 = vld [vmem:[%s2 + $0x168] sm:$0xff]
  %v182 = vld [vmem:[%s2 + $0x170] sm:$0xff]
  %v183 = vld [vmem:[%s2 + $0x178] sm:$0xff]
  %184 = vmatprep.subr.mxu0 0.0
  %185 = vmatpush1.msra.mxu0 %v151
  %186 = vmatprep.subr.mxu0 0.0
  %187 = vmatpush1.msra.mxu0 %v150
  %188 = vmatprep.subr.mxu0 0.0
  %189 = vmatpush1.msra.mxu0 %v149
  %190 = vmatprep.subr.mxu0 0.0
  %191 = vmatpush1.msra.mxu0 %v148
  %192 = vmatprep.subr.mxu0 0.0
  %193 = vmatpush1.msra.mxu0 %v147
  %194 = vmatprep.subr.mxu0 0.0
  %195 = vmatpush1.msra.mxu0 %v146
  %196 = vmatprep.subr.mxu0 0.0
  %197 = vmatpush1.msra.mxu0 %v145
  %198 = vmatprep.subr.mxu0 0.0
  %199 = vmatpush1.msra.mxu0 %v144
  %200 = vmatprep.subr.mxu0 0.0
  %201 = vmatpush1.msra.mxu0 %v143
  %202 = vmatprep.subr.mxu0 0.0
  %203 = vmatpush1.msra.mxu0 %v142
  %204 = vmatprep.subr.mxu0 0.0
  %205 = vmatpush1.msra.mxu0 %v141
  %206 = vmatprep.subr.mxu0 0.0
  %207 = vmatpush1.msra.mxu0 %v140
  %208 = vmatprep.subr.mxu0 0.0
  %209 = vmatpush1.msra.mxu0 %v139
  %210 = vmatprep.subr.mxu0 0.0
  %211 = vmatpush1.msra.mxu0 %v138
  %212 = vmatprep.subr.mxu0 0.0
  %213 = vmatpush1.msra.mxu0 %v137
  %214 = vmatprep.subr.mxu0 0.0
  %215 = vmatpush1.msra.mxu0 %v136
  %216 = vmatprep.subr.mxu0 0.0
  %217 = vmatpush2.msra.mxu0 %v167
  %218 = vmatprep.subr.mxu0 0.0
  %219 = vmatpush2.msra.mxu0 %v166
  %220 = vmatprep.subr.mxu0 0.0
  %221 = vmatpush2.msra.mxu0 %v165
  %222 = vmatprep.subr.mxu0 0.0
  %223 = vmatpush2.msra.mxu0 %v164
  %224 = vmatprep.subr.mxu0 0.0
  %225 = vmatpush2.msra.mxu0 %v163
  %226 = vmatprep.subr.mxu0 0.0
  %227 = vmatpush2.msra.mxu0 %v162
  %228 = vmatprep.subr.mxu0 0.0
  %229 = vmatpush2.msra.mxu0 %v161
  %230 = vmatprep.subr.mxu0 0.0
  %231 = vmatpush2.msra.mxu0 %v160
  %232 = vmatprep.subr.mxu0 0.0
  %233 = vmatpush2.msra.mxu0 %v159
  %234 = vmatprep.subr.mxu0 0.0
  %235 = vmatpush2.msra.mxu0 %v158
  %236 = vmatprep.subr.mxu0 0.0
  %237 = vmatpush2.msra.mxu0 %v157
  %238 = vmatprep.subr.mxu0 0.0
  %239 = vmatpush2.msra.mxu0 %v156
  %240 = vmatprep.subr.mxu0 0.0
  %241 = vmatpush2.msra.mxu0 %v155
  %242 = vmatprep.subr.mxu0 0.0
  %243 = vmatpush2.msra.mxu0 %v154
  %244 = vmatprep.subr.mxu0 0.0
  %245 = vmatpush2.msra.mxu0 %v153
  %246 = vmatprep.subr.mxu0 0.0
  %247 = vmatpush2.msra.mxu0 %v152
  %248 = vmatprep.mubr.f32.mxu0 %v29
  %249 = vmatmul.mubr.f32.gmra.mxu0 %v119
  %v250 = vpop.f32.mrf.mxu0
  %v251 = vadd.f32 0.0, %v250
  %v252 = vpop.f32.mrf.mxu0
  %253 = vmatprep.mubr.f32.mxu0 %v30
  %254 = vmatmul.mubr.f32.gmra.mxu0 %v120
  %v255 = vpop.f32.mrf.mxu0
  %v256 = vadd.f32 0.0, %v255
  %v257 = vpop.f32.mrf.mxu0
  %258 = vmatprep.mubr.f32.mxu0 %v31
  %259 = vmatmul.mubr.f32.gmra.mxu0 %v121
  %v260 = vpop.f32.mrf.mxu0
  %v261 = vadd.f32 0.0, %v260
  %v262 = vpop.f32.mrf.mxu0
  %263 = vmatprep.mubr.f32.mxu0 %v32
  %264 = vmatmul.mubr.f32.gmra.mxu0 %v122
  %v265 = vpop.f32.mrf.mxu0
  %v266 = vadd.f32 0.0, %v265
  %v267 = vpop.f32.mrf.mxu0
  %268 = vdwg.mxu0
  %269 = vmatprep.subr.mxu0 0.0
  %270 = vmatpush1.msra.mxu0 %v183
  %271 = vmatprep.subr.mxu0 0.0
  %272 = vmatpush1.msra.mxu0 %v182
  %273 = vmatprep.subr.mxu0 0.0
  %274 = vmatpush1.msra.mxu0 %v181
  %275 = vmatprep.subr.mxu0 0.0
  %276 = vmatpush1.msra.mxu0 %v180
  %277 = vmatprep.subr.mxu0 0.0
  %278 = vmatpush1.msra.mxu0 %v179
  %279 = vmatprep.subr.mxu0 0.0
  %280 = vmatpush1.msra.mxu0 %v178
  %281 = vmatprep.subr.mxu0 0.0
  %282 = vmatpush1.msra.mxu0 %v177
  %283 = vmatprep.subr.mxu0 0.0
  %284 = vmatpush1.msra.mxu0 %v176
  %285 = vmatprep.subr.mxu0 0.0
  %286 = vmatpush1.msra.mxu0 %v175
  %287 = vmatprep.subr.mxu0 0.0
  %288 = vmatpush1.msra.mxu0 %v174
  %289 = vmatprep.subr.mxu0 0.0
  %290 = vmatpush1.msra.mxu0 %v173
  %291 = vmatprep.subr.mxu0 0.0
  %292 = vmatpush1.msra.mxu0 %v172
  %293 = vmatprep.subr.mxu0 0.0
  %294 = vmatpush1.msra.mxu0 %v171
  %295 = vmatprep.subr.mxu0 0.0
  %296 = vmatpush1.msra.mxu0 %v170
  %297 = vmatprep.subr.mxu0 0.0
  %298 = vmatpush1.msra.mxu0 %v169
  %299 = vmatprep.subr.mxu0 0.0
  %300 = vmatpush1.msra.mxu0 %v168
  %301 = vmatprep.subr.mxu0 0.0
  %302 = vmatpush2.msra.mxu0 0.0
  %303 = vmatprep.subr.mxu0 0.0
  %304 = vmatpush2.msra.mxu0 0.0
  %305 = vmatprep.subr.mxu0 0.0
  %306 = vmatpush2.msra.mxu0 0.0
  %307 = vmatprep.subr.mxu0 0.0
  %308 = vmatpush2.msra.mxu0 0.0
  %309 = vmatprep.subr.mxu0 0.0
  %310 = vmatpush2.msra.mxu0 0.0
  %311 = vmatprep.subr.mxu0 0.0
  %312 = vmatpush2.msra.mxu0 0.0
  %313 = vmatprep.subr.mxu0 0.0
  %314 = vmatpush2.msra.mxu0 0.0
  %315 = vmatprep.subr.mxu0 0.0
  %316 = vmatpush2.msra.mxu0 0.0
  %317 = vmatprep.subr.mxu0 0.0
  %318 = vmatpush2.msra.mxu0 0.0
  %319 = vmatprep.subr.mxu0 0.0
  %320 = vmatpush2.msra.mxu0 0.0
  %321 = vmatprep.subr.mxu0 0.0
  %322 = vmatpush2.msra.mxu0 0.0
  %323 = vmatprep.subr.mxu0 0.0
  %324 = vmatpush2.msra.mxu0 0.0
  %325 = vmatprep.subr.mxu0 0.0
  %326 = vmatpush2.msra.mxu0 0.0
  %327 = vmatprep.subr.mxu0 0.0
  %328 = vmatpush2.msra.mxu0 0.0
  %329 = vmatprep.subr.mxu0 0.0
  %330 = vmatpush2.msra.mxu0 0.0
  %331 = vmatprep.subr.mxu0 0.0
  %332 = vmatpush2.msra.mxu0 0.0
  %333 = vmatprep.mubr.f32.mxu0 0.0
  %334 = vmatmul.mubr.f32.gmra.mxu0 %v132
  %v335 = vpop.f32.mrf.mxu0
  %v336 = vadd.f32 %v251, %v335
  %v337 = vpop.f32.mrf.mxu0
  %338 = vmatprep.mubr.f32.mxu0 0.0
  %339 = vmatmul.mubr.f32.gmra.mxu0 %v133
  %v340 = vpop.f32.mrf.mxu0
  %v341 = vadd.f32 %v256, %v340
  %v342 = vpop.f32.mrf.mxu0
  %343 = vmatprep.mubr.f32.mxu0 0.0
  %344 = vmatmul.mubr.f32.gmra.mxu0 %v134
  %v345 = vpop.f32.mrf.mxu0
  %v346 = vadd.f32 %v261, %v345
  %v347 = vpop.f32.mrf.mxu0
  %348 = vmatprep.mubr.f32.mxu0 0.0
  %349 = vmatmul.mubr.f32.gmra.mxu0 %v135
  %v350 = vpop.f32.mrf.mxu0
  %v351 = vadd.f32 %v266, %v350
  %v352 = vpop.f32.mrf.mxu0
  %353 = vdwg.mxu0
  %v354 = vadd.f32 %v336, %v341
  %v355 = vadd.f32 %v354, %v346
  %v356 = vadd.f32 %v355, %v351
  %v357 = vrot.slane %v356, 4
  %v358 = vadd.f32 %v356, %v357
  %v359 = vrot.slane %v358, 2
  %v360 = vadd.f32 %v358, %v359
  %v361 = vrot.slane %v360, 1
  %v362 = vadd.f32 %v360, %v361
  %v363 = vmul.f32 %v336, %v336
  %v364 = vmul.f32 %v341, %v341
  %v365 = vmul.f32 %v346, %v346
  %v366 = vmul.f32 %v351, %v351
  %v367 = vadd.f32 %v363, %v364
  %v368 = vadd.f32 %v367, %v365
  %v369 = vadd.f32 %v368, %v366
  %v370 = vrot.slane %v369, 4
  %v371 = vadd.f32 %v369, %v370
  %v372 = vrot.slane %v371, 2
  %v373 = vadd.f32 %v371, %v372
  %v374 = vrot.slane %v373, 1
  %v375 = vadd.f32 %v373, %v374
  %vm376 = vcmask 1040384
  %v377 = vsel %vm376, %v362, %v375
  %v378 = vld [vmem:[%s1] sm:$0xff]
  %v379 = vld [vmem:[%s1 + $0x8] sm:$0xff]
  %v380 = vld [vmem:[%s1 + $0x10] sm:$0xff]
  %v381 = vld [vmem:[%s1 + $0x18] sm:$0xff]
  %v382 = vld [vmem:[%s1 + $0x20] sm:$0xff]
  %v383 = vld [vmem:[%s1 + $0x28] sm:$0xff]
  %v384 = vld [vmem:[%s1 + $0x30] sm:$0xff]
  %v385 = vld [vmem:[%s1 + $0x38] sm:$0xff]
  %v386 = vld [vmem:[%s1 + $0x40] sm:$0xff]
  %v387 = vld [vmem:[%s1 + $0x48] sm:$0xff]
  %v388 = vld [vmem:[%s1 + $0x50] sm:$0xff]
  %v389 = vld [vmem:[%s1 + $0x58] sm:$0xff]
  %v390 = vld [vmem:[%s1 + $0x60] sm:$0xff]
  %v391 = vld [vmem:[%s1 + $0x68] sm:$0xff]
  %v392 = vld [vmem:[%s1 + $0x70] sm:$0xff]
  %v393 = vld [vmem:[%s1 + $0x78] sm:$0xff]
  %394 = vmatprep.subr.mxu0 0.0
  %395 = vmatpush1.msra.mxu0 %v393
  %396 = vmatprep.subr.mxu0 0.0
  %397 = vmatpush1.msra.mxu0 %v392
  %398 = vmatprep.subr.mxu0 0.0
  %399 = vmatpush1.msra.mxu0 %v391
  %400 = vmatprep.subr.mxu0 0.0
  %401 = vmatpush1.msra.mxu0 %v390
  %402 = vmatprep.subr.mxu0 0.0
  %403 = vmatpush1.msra.mxu0 %v389
  %404 = vmatprep.subr.mxu0 0.0
  %405 = vmatpush1.msra.mxu0 %v388
  %406 = vmatprep.subr.mxu0 0.0
  %407 = vmatpush1.msra.mxu0 %v387
  %408 = vmatprep.subr.mxu0 0.0
  %409 = vmatpush1.msra.mxu0 %v386
  %410 = vmatprep.subr.mxu0 0.0
  %411 = vmatpush1.msra.mxu0 %v385
  %412 = vmatprep.subr.mxu0 0.0
  %413 = vmatpush1.msra.mxu0 %v384
  %414 = vmatprep.subr.mxu0 0.0
  %415 = vmatpush1.msra.mxu0 %v383
  %416 = vmatprep.subr.mxu0 0.0
  %417 = vmatpush1.msra.mxu0 %v382
  %418 = vmatprep.subr.mxu0 0.0
  %419 = vmatpush1.msra.mxu0 %v381
  %420 = vmatprep.subr.mxu0 0.0
  %421 = vmatpush1.msra.mxu0 %v380
  %422 = vmatprep.subr.mxu0 0.0
  %423 = vmatpush1.msra.mxu0 %v379
  %424 = vmatprep.subr.mxu0 0.0
  %425 = vmatpush1.msra.mxu0 %v378
  %426 = vmatprep.subr.mxu0 0.0
  %427 = vmatpush2.msra.mxu0 0.0
  %428 = vmatprep.subr.mxu0 0.0
  %429 = vmatpush2.msra.mxu0 0.0
  %430 = vmatprep.subr.mxu0 0.0
  %431 = vmatpush2.msra.mxu0 0.0
  %432 = vmatprep.subr.mxu0 0.0
  %433 = vmatpush2.msra.mxu0 0.0
  %434 = vmatprep.subr.mxu0 0.0
  %435 = vmatpush2.msra.mxu0 0.0
  %436 = vmatprep.subr.mxu0 0.0
  %437 = vmatpush2.msra.mxu0 0.0
  %438 = vmatprep.subr.mxu0 0.0
  %439 = vmatpush2.msra.mxu0 0.0
  %440 = vmatprep.subr.mxu0 0.0
  %441 = vmatpush2.msra.mxu0 0.0
  %442 = vmatprep.subr.mxu0 0.0
  %443 = vmatpush2.msra.mxu0 0.0
  %444 = vmatprep.subr.mxu0 0.0
  %445 = vmatpush2.msra.mxu0 0.0
  %446 = vmatprep.subr.mxu0 0.0
  %447 = vmatpush2.msra.mxu0 0.0
  %448 = vmatprep.subr.mxu0 0.0
  %449 = vmatpush2.msra.mxu0 0.0
  %450 = vmatprep.subr.mxu0 0.0
  %451 = vmatpush2.msra.mxu0 0.0
  %452 = vmatprep.subr.mxu0 0.0
  %453 = vmatpush2.msra.mxu0 0.0
  %454 = vmatprep.subr.mxu0 0.0
  %455 = vmatpush2.msra.mxu0 0.0
  %456 = vmatprep.subr.mxu0 0.0
  %457 = vmatpush2.msra.mxu0 0.0
  %458 = vmatprep.mubr.f32.mxu0 0.0
  %459 = vmatmul.mubr.f32.gmra.mxu0 %v377
  %v460 = vpop.f32.mrf.mxu0
  %v461 = vadd.f32 0.0, %v460
  %v462 = vpop.f32.mrf.mxu0
  %463 = vdwg.mxu0
  %v464 = vmul.f32 %v461, %v461
  %v466 = vrot.slane %v464, 7
  %v468 = vsub.f32 %v461, %v466
  %v469 = vadd.f32 %v468, 1e-05
  %v470 = vrsqrt.pop %v469
  %v471 = vld [vmem:[%s3] sm:$0x1]
  %v473 = vlaneseq
  %v474 = vshrl.u32 %v473, 7
  %v475 = vsub.s32 0, %v474
  %v476 = vrot.slane %v471, %v475
  %v478 = vmul.f32 %v470, %v476
  %v479 = vld [vmem:[%s4] sm:$0x1]
  %v481 = vrot.slane %v478, 1
  %v483 = vmul.f32 %v461, %v481
  %v484 = vsub.f32 %v479, %v483
  %v485 = vlaneseq
  %v486 = vshrl.u32 %v485, 7
  %v487 = vsub.s32 1, %v486
  %v488 = vrot.slane %v478, %v487
  %v489 = vmul.f32 %v336, %v488
  %v490 = vmul.f32 %v341, %v488
  %v491 = vmul.f32 %v346, %v488
  %v492 = vmul.f32 %v351, %v488
  %v494 = vlaneseq
  %v495 = vshrl.u32 %v494, 7
  %v496 = vsub.s32 0, %v495
  %v497 = vrot.slane %v484, %v496
  %v499 = vadd.f32 %v489, %v497
  %v500 = vadd.f32 %v490, %v497
  %v501 = vadd.f32 %v491, %v497
  %v502 = vadd.f32 %v492, %v497
  %v503 = vmul.f32 %v499, 0.5
  %v504 = vmul.f32 %v500, 0.5
  %v505 = vmul.f32 %v501, 0.5
  %v506 = vmul.f32 %v502, 0.5
  %v507 = vtanh.pop %v503
  %v508 = vtanh.pop %v504
  %v509 = vtanh.pop %v505
  %v510 = vtanh.pop %v506
  %v511 = vmul.f32 %v507, 0.5
  %v512 = vmul.f32 %v508, 0.5
  %v513 = vmul.f32 %v509, 0.5
  %v514 = vmul.f32 %v510, 0.5
  %v515 = vadd.f32 %v511, 0.5
  %v516 = vadd.f32 %v512, 0.5
  %v517 = vadd.f32 %v513, 0.5
  %v518 = vadd.f32 %v514, 0.5
  %v519 = vmul.f32 %v499, %v515
  %v520 = vmul.f32 %v500, %v516
  %v521 = vmul.f32 %v501, %v517
  %v522 = vmul.f32 %v502, %v518
  %v523 = vrot.slane %v519, 7
  %v524 = vrot.slane %v520, 7
  %v525 = vrot.slane %v521, 7
  %v526 = vrot.slane %v522, 7
  %v527 = vsel %vm114, %v525, %v526
  %v528 = vsel %vm114, %v524, %v525
  %v529 = vsel %vm114, %v523, %v524
  %v530 = vsel %vm114, %v526, %v523
  %v531 = vmul.f32 %v530, %v94
  %v532 = vmul.f32 %v529, %v95
  %v533 = vmul.f32 %v528, %v96
  %v534 = vmul.f32 %v527, %v97
  %v535 = vrot.slane %v519, 1
  %v536 = vrot.slane %v520, 1
  %v537 = vrot.slane %v521, 1
  %v538 = vrot.slane %v522, 1
  %v539 = vsel %vm127, %v537, %v538
  %v540 = vsel %vm127, %v536, %v537
  %v541 = vsel %vm127, %v535, %v536
  %v542 = vsel %vm127, %v538, %v535
  %v543 = vmul.f32 %v541, %v106
  %v544 = vmul.f32 %v540, %v107
  %v545 = vmul.f32 %v539, %v108
  %v546 = vmul.f32 %v542, %v109
  %v547 = vld [vmem:[%s5] sm:$0xff]
  %v548 = vld [vmem:[%s5 + $0x8] sm:$0xff]
  %v549 = vld [vmem:[%s5 + $0x10] sm:$0xff]
  %v550 = vld [vmem:[%s5 + $0x18] sm:$0xff]
  %v551 = vld [vmem:[%s5 + $0x20] sm:$0xff]
  %v552 = vld [vmem:[%s5 + $0x28] sm:$0xff]
  %v553 = vld [vmem:[%s5 + $0x30] sm:$0xff]
  %v554 = vld [vmem:[%s5 + $0x38] sm:$0xff]
  %v555 = vld [vmem:[%s5 + $0x40] sm:$0xff]
  %v556 = vld [vmem:[%s5 + $0x48] sm:$0xff]
  %v557 = vld [vmem:[%s5 + $0x50] sm:$0xff]
  %v558 = vld [vmem:[%s5 + $0x58] sm:$0xff]
  %v559 = vld [vmem:[%s5 + $0x60] sm:$0xff]
  %v560 = vld [vmem:[%s5 + $0x68] sm:$0xff]
  %v561 = vld [vmem:[%s5 + $0x70] sm:$0xff]
  %v562 = vld [vmem:[%s5 + $0x78] sm:$0xff]
  %v563 = vld [vmem:[%s5 + $0x80] sm:$0xff]
  %v564 = vld [vmem:[%s5 + $0x88] sm:$0xff]
  %v565 = vld [vmem:[%s5 + $0x90] sm:$0xff]
  %v566 = vld [vmem:[%s5 + $0x98] sm:$0xff]
  %v567 = vld [vmem:[%s5 + $0xa0] sm:$0xff]
  %v568 = vld [vmem:[%s5 + $0xa8] sm:$0xff]
  %v569 = vld [vmem:[%s5 + $0xb0] sm:$0xff]
  %v570 = vld [vmem:[%s5 + $0xb8] sm:$0xff]
  %v571 = vld [vmem:[%s5 + $0xc0] sm:$0xff]
  %v572 = vld [vmem:[%s5 + $0xc8] sm:$0xff]
  %v573 = vld [vmem:[%s5 + $0xd0] sm:$0xff]
  %v574 = vld [vmem:[%s5 + $0xd8] sm:$0xff]
  %v575 = vld [vmem:[%s5 + $0xe0] sm:$0xff]
  %v576 = vld [vmem:[%s5 + $0xe8] sm:$0xff]
  %v577 = vld [vmem:[%s5 + $0xf0] sm:$0xff]
  %v578 = vld [vmem:[%s5 + $0xf8] sm:$0xff]
  %v579 = vld [vmem:[%s5 + $0x100] sm:$0xff]
  %v580 = vld [vmem:[%s5 + $0x108] sm:$0xff]
  %v581 = vld [vmem:[%s5 + $0x110] sm:$0xff]
  %v582 = vld [vmem:[%s5 + $0x118] sm:$0xff]
  %v583 = vld [vmem:[%s5 + $0x120] sm:$0xff]
  %v584 = vld [vmem:[%s5 + $0x128] sm:$0xff]
  %v585 = vld [vmem:[%s5 + $0x130] sm:$0xff]
  %v586 = vld [vmem:[%s5 + $0x138] sm:$0xff]
  %v587 = vld [vmem:[%s5 + $0x140] sm:$0xff]
  %v588 = vld [vmem:[%s5 + $0x148] sm:$0xff]
  %v589 = vld [vmem:[%s5 + $0x150] sm:$0xff]
  %v590 = vld [vmem:[%s5 + $0x158] sm:$0xff]
  %v591 = vld [vmem:[%s5 + $0x160] sm:$0xff]
  %v592 = vld [vmem:[%s5 + $0x168] sm:$0xff]
  %v593 = vld [vmem:[%s5 + $0x170] sm:$0xff]
  %v594 = vld [vmem:[%s5 + $0x178] sm:$0xff]
  %595 = vmatprep.subr.mxu0 0.0
  %596 = vmatpush1.msra.mxu0 %v562
  %597 = vmatprep.subr.mxu0 0.0
  %598 = vmatpush1.msra.mxu0 %v561
  %599 = vmatprep.subr.mxu0 0.0
  %600 = vmatpush1.msra.mxu0 %v560
  %601 = vmatprep.subr.mxu0 0.0
  %602 = vmatpush1.msra.mxu0 %v559
  %603 = vmatprep.subr.mxu0 0.0
  %604 = vmatpush1.msra.mxu0 %v558
  %605 = vmatprep.subr.mxu0 0.0
  %606 = vmatpush1.msra.mxu0 %v557
  %607 = vmatprep.subr.mxu0 0.0
  %608 = vmatpush1.msra.mxu0 %v556
  %609 = vmatprep.subr.mxu0 0.0
  %610 = vmatpush1.msra.mxu0 %v555
  %611 = vmatprep.subr.mxu0 0.0
  %612 = vmatpush1.msra.mxu0 %v554
  %613 = vmatprep.subr.mxu0 0.0
  %614 = vmatpush1.msra.mxu0 %v553
  %615 = vmatprep.subr.mxu0 0.0
  %616 = vmatpush1.msra.mxu0 %v552
  %617 = vmatprep.subr.mxu0 0.0
  %618 = vmatpush1.msra.mxu0 %v551
  %619 = vmatprep.subr.mxu0 0.0
  %620 = vmatpush1.msra.mxu0 %v550
  %621 = vmatprep.subr.mxu0 0.0
  %622 = vmatpush1.msra.mxu0 %v549
  %623 = vmatprep.subr.mxu0 0.0
  %624 = vmatpush1.msra.mxu0 %v548
  %625 = vmatprep.subr.mxu0 0.0
  %626 = vmatpush1.msra.mxu0 %v547
  %627 = vmatprep.subr.mxu0 0.0
  %628 = vmatpush2.msra.mxu0 %v578
  %629 = vmatprep.subr.mxu0 0.0
  %630 = vmatpush2.msra.mxu0 %v577
  %631 = vmatprep.subr.mxu0 0.0
  %632 = vmatpush2.msra.mxu0 %v576
  %633 = vmatprep.subr.mxu0 0.0
  %634 = vmatpush2.msra.mxu0 %v575
  %635 = vmatprep.subr.mxu0 0.0
  %636 = vmatpush2.msra.mxu0 %v574
  %637 = vmatprep.subr.mxu0 0.0
  %638 = vmatpush2.msra.mxu0 %v573
  %639 = vmatprep.subr.mxu0 0.0
  %640 = vmatpush2.msra.mxu0 %v572
  %641 = vmatprep.subr.mxu0 0.0
  %642 = vmatpush2.msra.mxu0 %v571
  %643 = vmatprep.subr.mxu0 0.0
  %644 = vmatpush2.msra.mxu0 %v570
  %645 = vmatprep.subr.mxu0 0.0
  %646 = vmatpush2.msra.mxu0 %v569
  %647 = vmatprep.subr.mxu0 0.0
  %648 = vmatpush2.msra.mxu0 %v568
  %649 = vmatprep.subr.mxu0 0.0
  %650 = vmatpush2.msra.mxu0 %v567
  %651 = vmatprep.subr.mxu0 0.0
  %652 = vmatpush2.msra.mxu0 %v566
  %653 = vmatprep.subr.mxu0 0.0
  %654 = vmatpush2.msra.mxu0 %v565
  %655 = vmatprep.subr.mxu0 0.0
  %656 = vmatpush2.msra.mxu0 %v564
  %657 = vmatprep.subr.mxu0 0.0
  %658 = vmatpush2.msra.mxu0 %v563
  %659 = vmatprep.mubr.f32.mxu0 %v519
  %660 = vmatmul.mubr.f32.gmra.mxu0 %v531
  %v661 = vpop.f32.mrf.mxu0
  %v662 = vadd.f32 0.0, %v661
  %v663 = vpop.f32.mrf.mxu0
  %664 = vmatprep.mubr.f32.mxu0 %v520
  %665 = vmatmul.mubr.f32.gmra.mxu0 %v532
  %v666 = vpop.f32.mrf.mxu0
  %v667 = vadd.f32 0.0, %v666
  %v668 = vpop.f32.mrf.mxu0
  %669 = vmatprep.mubr.f32.mxu0 %v521
  %670 = vmatmul.mubr.f32.gmra.mxu0 %v533
  %v671 = vpop.f32.mrf.mxu0
  %v672 = vadd.f32 0.0, %v671
  %v673 = vpop.f32.mrf.mxu0
  %674 = vmatprep.mubr.f32.mxu0 %v522
  %675 = vmatmul.mubr.f32.gmra.mxu0 %v534
  %v676 = vpop.f32.mrf.mxu0
  %v677 = vadd.f32 0.0, %v676
  %v678 = vpop.f32.mrf.mxu0
  %679 = vdwg.mxu0
  %680 = vmatprep.subr.mxu0 0.0
  %681 = vmatpush1.msra.mxu0 %v594
  %682 = vmatprep.subr.mxu0 0.0
  %683 = vmatpush1.msra.mxu0 %v593
  %684 = vmatprep.subr.mxu0 0.0
  %685 = vmatpush1.msra.mxu0 %v592
  %686 = vmatprep.subr.mxu0 0.0
  %687 = vmatpush1.msra.mxu0 %v591
  %688 = vmatprep.subr.mxu0 0.0
  %689 = vmatpush1.msra.mxu0 %v590
  %690 = vmatprep.subr.mxu0 0.0
  %691 = vmatpush1.msra.mxu0 %v589
  %692 = vmatprep.subr.mxu0 0.0
  %693 = vmatpush1.msra.mxu0 %v588
  %694 = vmatprep.subr.mxu0 0.0
  %695 = vmatpush1.msra.mxu0 %v587
  %696 = vmatprep.subr.mxu0 0.0
  %697 = vmatpush1.msra.mxu0 %v586
  %698 = vmatprep.subr.mxu0 0.0
  %699 = vmatpush1.msra.mxu0 %v585
  %700 = vmatprep.subr.mxu0 0.0
  %701 = vmatpush1.msra.mxu0 %v584
  %702 = vmatprep.subr.mxu0 0.0
  %703 = vmatpush1.msra.mxu0 %v583
  %704 = vmatprep.subr.mxu0 0.0
  %705 = vmatpush1.msra.mxu0 %v582
  %706 = vmatprep.subr.mxu0 0.0
  %707 = vmatpush1.msra.mxu0 %v581
  %708 = vmatprep.subr.mxu0 0.0
  %709 = vmatpush1.msra.mxu0 %v580
  %710 = vmatprep.subr.mxu0 0.0
  %711 = vmatpush1.msra.mxu0 %v579
  %712 = vmatprep.subr.mxu0 0.0
  %713 = vmatpush2.msra.mxu0 0.0
  %714 = vmatprep.subr.mxu0 0.0
  %715 = vmatpush2.msra.mxu0 0.0
  %716 = vmatprep.subr.mxu0 0.0
  %717 = vmatpush2.msra.mxu0 0.0
  %718 = vmatprep.subr.mxu0 0.0
  %719 = vmatpush2.msra.mxu0 0.0
  %720 = vmatprep.subr.mxu0 0.0
  %721 = vmatpush2.msra.mxu0 0.0
  %722 = vmatprep.subr.mxu0 0.0
  %723 = vmatpush2.msra.mxu0 0.0
  %724 = vmatprep.subr.mxu0 0.0
  %725 = vmatpush2.msra.mxu0 0.0
  %726 = vmatprep.subr.mxu0 0.0
  %727 = vmatpush2.msra.mxu0 0.0
  %728 = vmatprep.subr.mxu0 0.0
  %729 = vmatpush2.msra.mxu0 0.0
  %730 = vmatprep.subr.mxu0 0.0
  %731 = vmatpush2.msra.mxu0 0.0
  %732 = vmatprep.subr.mxu0 0.0
  %733 = vmatpush2.msra.mxu0 0.0
  %734 = vmatprep.subr.mxu0 0.0
  %735 = vmatpush2.msra.mxu0 0.0
  %736 = vmatprep.subr.mxu0 0.0
  %737 = vmatpush2.msra.mxu0 0.0
  %738 = vmatprep.subr.mxu0 0.0
  %739 = vmatpush2.msra.mxu0 0.0
  %740 = vmatprep.subr.mxu0 0.0
  %741 = vmatpush2.msra.mxu0 0.0
  %742 = vmatprep.subr.mxu0 0.0
  %743 = vmatpush2.msra.mxu0 0.0
  %744 = vmatprep.mubr.f32.mxu0 0.0
  %745 = vmatmul.mubr.f32.gmra.mxu0 %v543
  %v746 = vpop.f32.mrf.mxu0
  %v747 = vadd.f32 %v662, %v746
  %v748 = vpop.f32.mrf.mxu0
  %749 = vmatprep.mubr.f32.mxu0 0.0
  %750 = vmatmul.mubr.f32.gmra.mxu0 %v544
  %v751 = vpop.f32.mrf.mxu0
  %v752 = vadd.f32 %v667, %v751
  %v753 = vpop.f32.mrf.mxu0
  %754 = vmatprep.mubr.f32.mxu0 0.0
  %755 = vmatmul.mubr.f32.gmra.mxu0 %v545
  %v756 = vpop.f32.mrf.mxu0
  %v757 = vadd.f32 %v672, %v756
  %v758 = vpop.f32.mrf.mxu0
  %759 = vmatprep.mubr.f32.mxu0 0.0
  %760 = vmatmul.mubr.f32.gmra.mxu0 %v546
  %v761 = vpop.f32.mrf.mxu0
  %v762 = vadd.f32 %v677, %v761
  %v763 = vpop.f32.mrf.mxu0
  %764 = vdwg.mxu0
  %v765 = vadd.f32 %v747, %v752
  %v766 = vadd.f32 %v765, %v757
  %v767 = vadd.f32 %v766, %v762
  %v768 = vrot.slane %v767, 4
  %v769 = vadd.f32 %v767, %v768
  %v770 = vrot.slane %v769, 2
  %v771 = vadd.f32 %v769, %v770
  %v772 = vrot.slane %v771, 1
  %v773 = vadd.f32 %v771, %v772
  %v774 = vmul.f32 %v747, %v747
  %v775 = vmul.f32 %v752, %v752
  %v776 = vmul.f32 %v757, %v757
  %v777 = vmul.f32 %v762, %v762
  %v778 = vadd.f32 %v774, %v775
  %v779 = vadd.f32 %v778, %v776
  %v780 = vadd.f32 %v779, %v777
  %v781 = vrot.slane %v780, 4
  %v782 = vadd.f32 %v780, %v781
  %v783 = vrot.slane %v782, 2
  %v784 = vadd.f32 %v782, %v783
  %v785 = vrot.slane %v784, 1
  %v786 = vadd.f32 %v784, %v785
  %v787 = vsel %vm376, %v773, %v786
  %788 = vmatprep.subr.mxu0 0.0
  %789 = vmatpush1.msra.mxu0 %v393
  %790 = vmatprep.subr.mxu0 0.0
  %791 = vmatpush1.msra.mxu0 %v392
  %792 = vmatprep.subr.mxu0 0.0
  %793 = vmatpush1.msra.mxu0 %v391
  %794 = vmatprep.subr.mxu0 0.0
  %795 = vmatpush1.msra.mxu0 %v390
  %796 = vmatprep.subr.mxu0 0.0
  %797 = vmatpush1.msra.mxu0 %v389
  %798 = vmatprep.subr.mxu0 0.0
  %799 = vmatpush1.msra.mxu0 %v388
  %800 = vmatprep.subr.mxu0 0.0
  %801 = vmatpush1.msra.mxu0 %v387
  %802 = vmatprep.subr.mxu0 0.0
  %803 = vmatpush1.msra.mxu0 %v386
  %804 = vmatprep.subr.mxu0 0.0
  %805 = vmatpush1.msra.mxu0 %v385
  %806 = vmatprep.subr.mxu0 0.0
  %807 = vmatpush1.msra.mxu0 %v384
  %808 = vmatprep.subr.mxu0 0.0
  %809 = vmatpush1.msra.mxu0 %v383
  %810 = vmatprep.subr.mxu0 0.0
  %811 = vmatpush1.msra.mxu0 %v382
  %812 = vmatprep.subr.mxu0 0.0
  %813 = vmatpush1.msra.mxu0 %v381
  %814 = vmatprep.subr.mxu0 0.0
  %815 = vmatpush1.msra.mxu0 %v380
  %816 = vmatprep.subr.mxu0 0.0
  %817 = vmatpush1.msra.mxu0 %v379
  %818 = vmatprep.subr.mxu0 0.0
  %819 = vmatpush1.msra.mxu0 %v378
  %820 = vmatprep.subr.mxu0 0.0
  %821 = vmatpush2.msra.mxu0 0.0
  %822 = vmatprep.subr.mxu0 0.0
  %823 = vmatpush2.msra.mxu0 0.0
  %824 = vmatprep.subr.mxu0 0.0
  %825 = vmatpush2.msra.mxu0 0.0
  %826 = vmatprep.subr.mxu0 0.0
  %827 = vmatpush2.msra.mxu0 0.0
  %828 = vmatprep.subr.mxu0 0.0
  %829 = vmatpush2.msra.mxu0 0.0
  %830 = vmatprep.subr.mxu0 0.0
  %831 = vmatpush2.msra.mxu0 0.0
  %832 = vmatprep.subr.mxu0 0.0
  %833 = vmatpush2.msra.mxu0 0.0
  %834 = vmatprep.subr.mxu0 0.0
  %835 = vmatpush2.msra.mxu0 0.0
  %836 = vmatprep.subr.mxu0 0.0
  %837 = vmatpush2.msra.mxu0 0.0
  %838 = vmatprep.subr.mxu0 0.0
  %839 = vmatpush2.msra.mxu0 0.0
  %840 = vmatprep.subr.mxu0 0.0
  %841 = vmatpush2.msra.mxu0 0.0
  %842 = vmatprep.subr.mxu0 0.0
  %843 = vmatpush2.msra.mxu0 0.0
  %844 = vmatprep.subr.mxu0 0.0
  %845 = vmatpush2.msra.mxu0 0.0
  %846 = vmatprep.subr.mxu0 0.0
  %847 = vmatpush2.msra.mxu0 0.0
  %848 = vmatprep.subr.mxu0 0.0
  %849 = vmatpush2.msra.mxu0 0.0
  %850 = vmatprep.subr.mxu0 0.0
  %851 = vmatpush2.msra.mxu0 0.0
  %852 = vmatprep.mubr.f32.mxu0 0.0
  %853 = vmatmul.mubr.f32.gmra.mxu0 %v787
  %v854 = vpop.f32.mrf.mxu0
  %v855 = vadd.f32 0.0, %v854
  %v856 = vpop.f32.mrf.mxu0
  %857 = vdwg.mxu0
  %v858 = vmul.f32 %v855, %v855
  %v860 = vrot.slane %v858, 7
  %v862 = vsub.f32 %v855, %v860
  %v863 = vadd.f32 %v862, 1e-05
  %v864 = vrsqrt.pop %v863
  %v865 = vld [vmem:[%s6] sm:$0x1]
  %v867 = vlaneseq
  %v868 = vshrl.u32 %v867, 7
  %v869 = vsub.s32 0, %v868
  %v870 = vrot.slane %v865, %v869
  %v872 = vmul.f32 %v864, %v870
  %v873 = vld [vmem:[%s7] sm:$0x1]
  %v875 = vrot.slane %v872, 1
  %v877 = vmul.f32 %v855, %v875
  %v878 = vsub.f32 %v873, %v877
  %v879 = vlaneseq
  %v880 = vshrl.u32 %v879, 7
  %v881 = vsub.s32 1, %v880
  %v882 = vrot.slane %v872, %v881
  %v883 = vmul.f32 %v747, %v882
  %v884 = vmul.f32 %v752, %v882
  %v885 = vmul.f32 %v757, %v882
  %v886 = vmul.f32 %v762, %v882
  %v888 = vlaneseq
  %v889 = vshrl.u32 %v888, 7
  %v890 = vsub.s32 0, %v889
  %v891 = vrot.slane %v878, %v890
  %v893 = vadd.f32 %v883, %v891
  %v894 = vadd.f32 %v884, %v891
  %v895 = vadd.f32 %v885, %v891
  %v896 = vadd.f32 %v886, %v891
  %v897 = vadd.f32 %v893, %v29
  %v898 = vadd.f32 %v894, %v30
  %v899 = vadd.f32 %v895, %v31
  %v900 = vadd.f32 %v896, %v32
  %v901 = vmul.f32 %v897, 0.5
  %v902 = vmul.f32 %v898, 0.5
  %v903 = vmul.f32 %v899, 0.5
  %v904 = vmul.f32 %v900, 0.5
  %v905 = vtanh.pop %v901
  %v906 = vtanh.pop %v902
  %v907 = vtanh.pop %v903
  %v908 = vtanh.pop %v904
  %v909 = vmul.f32 %v905, 0.5
  %v910 = vmul.f32 %v906, 0.5
  %v911 = vmul.f32 %v907, 0.5
  %v912 = vmul.f32 %v908, 0.5
  %v913 = vadd.f32 %v909, 0.5
  %v914 = vadd.f32 %v910, 0.5
  %v915 = vadd.f32 %v911, 0.5
  %v916 = vadd.f32 %v912, 0.5
  %v917 = vmul.f32 %v897, %v913
  %v918 = vmul.f32 %v898, %v914
  %v919 = vmul.f32 %v899, %v915
  %v920 = vmul.f32 %v900, %v916
  %921 = vst [vmem:[%s8] sm:$0xff] %v917
  %922 = vst [vmem:[%s8 + $0x8] sm:$0xff] %v918
  %923 = vst [vmem:[%s8 + $0x10] sm:$0xff] %v919
  %924 = vst [vmem:[%s8 + $0x18] sm:$0xff] %v920
  // Predicated region
  $region34: #{_forward.1} parent=0 // pred_check
    _
  $region35: #{_forward.1} parent=0 // pred_check_branch
    %926 = sbr.rel (0) target = $region37
  $region36: #{_forward.1} parent=0 // pred_region
    _
  $region37: #{_forward.1} parent=0 // pred_fallthru
    _
  // Predicated region
  $region38: #{_forward.1} parent=0 // pred_check
    _
  $region39: #{_forward.1} parent=0 // pred_check_branch
    %928 = sbr.rel (0) target = $region41
  $region40: #{_forward.1} parent=0 // pred_region
    _
  $region41: #{_forward.1} parent=0 // pred_fallthru
    _

</llo_original>
